<compile_context>
chip_gen: v7x
topology: tpu7x:2x2x1
jax: 0.10.0
libtpu: 0.0.40
codegen_flags: <defaults>
</compile_context>

<pallas_src>
import functools

import jax
import jax.numpy as jnp
from jax.experimental import pallas as pl
from jax.experimental.pallas import tpu as pltpu


def _round_up(n, m):
    return ((n + m - 1) // m) * m


def _vmem_budget():
    """Returns (vmem_limit_bytes, per-grid-step working-set budget)."""
    cap = None
    try:
        info = pltpu.get_tpu_info()
        for name in ("vmem_capacity_bytes", "vmem_size_bytes", "vmem_bytes"):
            v = getattr(info, name, None)
            if v:
                cap = int(v)
                break
    except Exception:
        cap = None
    if cap is None:
        cap = 64 * 1024 * 1024                 # conservative: v7x per-TC VMEM
    limit = min((cap * 3) // 4, 96 * 1024 * 1024)  # 48 MiB v7x, 96 MiB v5e/v6e
    step_budget = (limit * 2) // 3             # headroom under double-buffering
    return limit, step_budget


def _pick_mode_tile(m_total, per_mode_bytes, budget_bytes, min_steps=4):
    """Largest exact divisor of m_total fitting the per-step VMEM budget,
    preferring >= min_steps grid steps (pipelining; 2 steps/TC on v7x)."""
    divisors = [d for d in range(1, m_total + 1) if m_total % d == 0]
    fit = [d for d in divisors if d * per_mode_bytes <= budget_bytes] or [1]
    pref = [d for d in fit if m_total // d >= min_steps]
    return max(pref) if pref else max(fit)


def _spectral_mix_kernel(x_ref, w_ref, o_ref, *, b, cout):
    """One MXU pass per mode; combine the four partial products in f32.

    x_ref: (mt, 2B_pad, Cin_pad)     bf16  rows = [xr ; xi ; 0-pad]
    w_ref: (mt, Cin_pad, 2Cout_pad)  bf16  cols = [wr | wi | 0-pad]
    o_ref: (mt, B, 2*Cout)           f32   cols = [real | imag]
    """
    p = jnp.einsum("mbi,mio->mbo", x_ref[...], w_ref[...],
                   preferred_element_type=jnp.float32)
    real = p[:, :b, :cout] - p[:, b:2 * b, cout:2 * cout]   # xr*wr - xi*wi
    imag = p[:, :b, cout:2 * cout] + p[:, b:2 * b, :cout]   # xr*wi + xi*wr
    o_ref[...] = jnp.concatenate([real, imag], axis=-1)


def spectral_mix_pallas(x_p, w_p, b, cout):
    """x_p: (M, 2B_pad, Cin_pad) bf16, w_p: (M, Cin_pad, 2Cout_pad) bf16
       -> (M, B, 2*Cout) f32 with cols [real | imag] of complex(x) @ complex(w)."""
    m_total, b2p, cinp = x_p.shape
    c2p = w_p.shape[-1]

    # Per-mode bytes: double-buffered streams + in-kernel f32 temporaries.
    stream_bytes = b2p * cinp * 2 + cinp * c2p * 2 + b * 2 * cout * 4
    temp_bytes = b2p * c2p * 4 + 4 * b * cout * 4
    per_mode = 2 * stream_bytes + temp_bytes
    vmem_limit, step_budget = _vmem_budget()
    mt = _pick_mode_tile(m_total, per_mode, step_budget)

    kernel = functools.partial(_spectral_mix_kernel, b=b, cout=cout)
    return pl.pallas_call(
        kernel,
        out_shape=jax.ShapeDtypeStruct((m_total, b, 2 * cout), jnp.float32),
        grid=(m_total // mt,),
        in_specs=[
            pl.BlockSpec((mt, b2p, cinp), lambda m: (m, 0, 0)),
            pl.BlockSpec((mt, cinp, c2p), lambda m: (m, 0, 0)),
        ],
        out_specs=pl.BlockSpec((mt, b, 2 * cout), lambda m: (m, 0, 0)),
        compiler_params=pltpu.CompilerParams(
            dimension_semantics=("parallel",),
            vmem_limit_bytes=vmem_limit,
        ),
    )(x_p, w_p)


def pack_spectral_weights(w1r, w1i, w2r, w2i):
    """One-time (outside the jitted step) repack of SpectralConv2d weights to
    (M_total, Cin_pad, 2*Cout_pad) bf16, columns laid out as [wr | wi]."""
    cin, cout, m1, m2 = w1r.shape
    m_total = 2 * m1 * m2
    wr = jnp.stack([w1r, w2r], axis=0)                  # (2, Cin, Cout, m1, m2)
    wi = jnp.stack([w1i, w2i], axis=0)
    wr = jnp.transpose(wr, (0, 3, 4, 1, 2)).reshape(m_total, cin, cout)
    wi = jnp.transpose(wi, (0, 3, 4, 1, 2)).reshape(m_total, cin, cout)
    w = jnp.concatenate([wr, wi], axis=-1).astype(jnp.bfloat16)
    cinp = _round_up(cin, 8)
    c2p = _round_up(2 * cout, 8)
    return jnp.pad(w, ((0, 0), (0, cinp - cin), (0, c2p - 2 * cout)))


def spectral_conv2d(x, w_packed, *, modes1, modes2, out_channels):
    """Forward pass matching SpectralConv2d.forward (PyTorch, NCHW)."""
    B, Cin, H, W = x.shape
    Cout = out_channels
    Wf = W // 2 + 1
    m_total = 2 * modes1 * modes2

    # TODO(synk): FFTs stay as jnp.fft glue; only the spectral mix is in-kernel.
    x_ft = jnp.fft.rfft2(x)                             # (B, Cin, H, Wf) c64

    # Pack the two kept mode blocks: (M_total, 2B, Cin), rows = [real ; imag].
    top = x_ft[:, :, :modes1, :modes2]                  # low positive rows
    bot = x_ft[:, :, H - modes1:, :modes2]              # low negative rows
    xm = jnp.stack([top, bot], axis=0)                  # (2, B, Cin, m1, m2)
    xm = jnp.transpose(xm, (0, 3, 4, 1, 2)).reshape(m_total, B, Cin)
    x_packed = jnp.concatenate([jnp.real(xm), jnp.imag(xm)],
                               axis=1).astype(jnp.bfloat16)

    b2p = _round_up(2 * B, 8)
    cinp = w_packed.shape[1]
    x_p = jnp.pad(x_packed, ((0, 0), (0, b2p - 2 * B), (0, cinp - Cin)))

    out = spectral_mix_pallas(x_p, w_packed, B, Cout)   # (M_total, B, 2*Cout)

    out_c = jax.lax.complex(out[..., :Cout], out[..., Cout:])
    out_c = out_c.reshape(2, modes1, modes2, B, Cout)
    out_c = jnp.transpose(out_c, (0, 3, 4, 1, 2))       # (2, B, Cout, m1, m2)

    mid_rows = H - 2 * modes1
    if mid_rows >= 0:
        # Assemble the padded spectrum with concats (no zero-init + scatter).
        col = jnp.concatenate(
            [out_c[0],
             jnp.zeros((B, Cout, mid_rows, modes2), jnp.complex64),
             out_c[1]], axis=2)                         # (B, Cout, H, modes2)
        out_ft = jnp.concatenate(
            [col, jnp.zeros((B, Cout, H, Wf - modes2), jnp.complex64)], axis=3)
    else:
        # Overlapping row blocks (2*modes1 > H): keep PyTorch scatter semantics.
        out_ft = jnp.zeros((B, Cout, H, Wf), dtype=jnp.complex64)
        out_ft = out_ft.at[:, :, :modes1, :modes2].set(out_c[0])
        out_ft = out_ft.at[:, :, H - modes1:, :modes2].set(out_c[1])

    return jnp.fft.irfft2(out_ft, s=(H, W))             # (B, Cout, H, W) f32


if __name__ == "__main__":
    # Small shapes consistent with the module.
    B, Cin, Cout = 2, 4, 4
    H = W = 16
    modes1 = modes2 = 4

    key = jax.random.PRNGKey(0)
    kx, k1r, k1i, k2r, k2i = jax.random.split(key, 5)

    x = jax.random.normal(kx, (B, Cin, H, W), dtype=jnp.float32)

    # Deterministic weight init mirroring
    #   scale * torch.rand(Cin, Cout, m1, m2, dtype=cfloat)
    scale = 1.0 / (Cin * Cout)
    w_shape = (Cin, Cout, modes1, modes2)
    w1r = scale * jax.random.uniform(k1r, w_shape, dtype=jnp.float32)
    w1i = scale * jax.random.uniform(k1i, w_shape, dtype=jnp.float32)
    w2r = scale * jax.random.uniform(k2r, w_shape, dtype=jnp.float32)
    w2i = scale * jax.random.uniform(k2i, w_shape, dtype=jnp.float32)

    # One-time weight repack, kept outside the jitted step.
    w_packed = jax.block_until_ready(pack_spectral_weights(w1r, w1i, w2r, w2i))

    fwd = jax.jit(functools.partial(spectral_conv2d, modes1=modes1,
                                    modes2=modes2, out_channels=Cout))
    out = jax.block_until_ready(fwd(x, w_packed))

    # Pure-JAX f32 reference of the same forward pass for a sanity check.
    def ref_forward(x, w1r, w1i, w2r, w2i):
        x_ft = jnp.fft.rfft2(x)
        w1 = (w1r + 1j * w1i).astype(jnp.complex64)
        w2 = (w2r + 1j * w2i).astype(jnp.complex64)
        out_ft = jnp.zeros((B, Cout, H, W // 2 + 1), dtype=jnp.complex64)
        out_ft = out_ft.at[:, :, :modes1, :modes2].set(
            jnp.einsum('bixy,ioxy->boxy', x_ft[:, :, :modes1, :modes2], w1))
        out_ft = out_ft.at[:, :, H - modes1:, :modes2].set(
            jnp.einsum('bixy,ioxy->boxy', x_ft[:, :, H - modes1:, :modes2], w2))
        return jnp.fft.irfft2(out_ft, s=(H, W))

    ref = jax.block_until_ready(ref_forward(x, w1r, w1i, w2r, w2i))
    assert out.shape == (B, Cout, H, W)
    # Inputs are stored in bf16 -> compare with a relative tolerance.
    rel_err = float(jnp.max(jnp.abs(out - ref)) /
                    (jnp.max(jnp.abs(ref)) + 1e-12))
    assert rel_err < 5e-2, f"relative error too large: {rel_err}"

    print("KERNEL_OK")
</pallas_src>

<mosaic_0001>
module attributes {stable_mosaic.version = 11 : i64} {
  func.func @_spectral_mix_kernel(%arg0: i32, %arg1: memref<8x8x8xbf16, #tpu.memory_space<vmem>>, %arg2: memref<8x8x8xbf16, #tpu.memory_space<vmem>>, %arg3: memref<8x2x8xf32, #tpu.memory_space<vmem>>) attributes {dimension_semantics = [#tpu.dimension_semantics<parallel>], iteration_bounds = array<i64: 4>, scalar_prefetch = 0 : i64, scratch_operands = 0 : i64, tpu.core_type = #tpu.core_type<tc>, window_params = [{transform_indices = @transform_0, window_bounds = array<i64: 8, 8, 8>}, {transform_indices = @transform_1, window_bounds = array<i64: 8, 8, 8>}, {transform_indices = @transform_2, window_bounds = array<i64: 8, 2, 8>}]} {
    %c0 = arith.constant 0 : index
    %c0_0 = arith.constant 0 : index
    %c0_1 = arith.constant 0 : index
    %0 = vector.load %arg1[%c0, %c0_0, %c0_1] : memref<8x8x8xbf16, #tpu.memory_space<vmem>>, vector<8x8x8xbf16>
    %c0_2 = arith.constant 0 : index
    %c0_3 = arith.constant 0 : index
    %c0_4 = arith.constant 0 : index
    %1 = vector.load %arg2[%c0_2, %c0_3, %c0_4] : memref<8x8x8xbf16, #tpu.memory_space<vmem>>, vector<8x8x8xbf16>
    "tpu.trace_start"() <{level = 10 : i32, message = "mbi,mio->mbo"}> : () -> ()
    %cst = arith.constant dense<0.000000e+00> : vector<8x8x8xf32>
    %2 = tpu.matmul %0, %1, %cst {dimension_numbers = #tpu.dot_dimension_numbers<[2], [1], [1], [2], [0, 0, 0, 1, 1, 2], [0], [0]>} : vector<8x8x8xbf16>, vector<8x8x8xbf16>, vector<8x8x8xf32> -> vector<8x8x8xf32>
    "tpu.trace_stop"() : () -> ()
    %3 = vector.extract_strided_slice %2 {offsets = [0, 0, 0], sizes = [8, 2, 4], strides = [1, 1, 1]} : vector<8x8x8xf32> to vector<8x2x4xf32>
    %4 = vector.extract_strided_slice %2 {offsets = [0, 2, 4], sizes = [8, 2, 4], strides = [1, 1, 1]} : vector<8x8x8xf32> to vector<8x2x4xf32>
    %5 = arith.subf %3, %4 : vector<8x2x4xf32>
    %6 = vector.extract_strided_slice %2 {offsets = [0, 0, 4], sizes = [8, 2, 4], strides = [1, 1, 1]} : vector<8x8x8xf32> to vector<8x2x4xf32>
    %7 = vector.extract_strided_slice %2 {offsets = [0, 2, 0], sizes = [8, 2, 4], strides = [1, 1, 1]} : vector<8x8x8xf32> to vector<8x2x4xf32>
    %8 = arith.addf %6, %7 : vector<8x2x4xf32>
    %9 = tpu.concatenate %5, %8 in 2 : vector<8x2x4xf32>, vector<8x2x4xf32> -> vector<8x2x8xf32>
    %c0_5 = arith.constant 0 : index
    %c0_6 = arith.constant 0 : index
    %c0_7 = arith.constant 0 : index
    %10 = vector.load %arg3[%c0_5, %c0_6, %c0_7] : memref<8x2x8xf32, #tpu.memory_space<vmem>>, vector<8x2x8xf32>
    tpu.vector_store %arg3[%c0_5, %c0_6, %c0_7], %9 {strides = array<i32>} : memref<8x2x8xf32, #tpu.memory_space<vmem>>, vector<8x2x8xf32>,
    return
  }
  func.func @transform_0(%arg0: i32) -> (i32, i32, i32) {
    %c0_i32 = arith.constant 0 : i32
    %c0_i32_0 = arith.constant 0 : i32
    %c0_i32_1 = arith.constant 0 : i32
    return %arg0, %c0_i32, %c0_i32_0 : i32, i32, i32
  }
  func.func @transform_1(%arg0: i32) -> (i32, i32, i32) {
    %c0_i32 = arith.constant 0 : i32
    %c0_i32_0 = arith.constant 0 : i32
    %c0_i32_1 = arith.constant 0 : i32
    return %arg0, %c0_i32, %c0_i32_0 : i32, i32, i32
  }
  func.func @transform_2(%arg0: i32) -> (i32, i32, i32) {
    %c0_i32 = arith.constant 0 : i32
    %c0_i32_0 = arith.constant 0 : i32
    %c0_i32_1 = arith.constant 0 : i32
    return %arg0, %c0_i32, %c0_i32_0 : i32, i32, i32
  }
}

</mosaic_0001>

<llo_original>
// kernel: reverse.1
$region0: #{reverse.1}
  %s0 = inlined_call_operand.vmem [shape: f32[2,4,16,7], index: 0, kind: input, shape index: {}]
  %s1 = inlined_call_operand.vmem [shape: f32[2,4,16,7], index: 1, kind: output, shape index: {}]
  $region1: #{reverse.1} parent=0
    #allocation0 [shape = 'u8[65536]{0}', space=vmem, size = 0x10000, scoped, tag = 'operand span for operand 0']
    #allocation1 [shape = 'u8[32768]{0}', space=vmem, size = 0x8000, scoped, tag = 'operand span for operand 1']
    %s2 = scalar_lea.vmem [#allocation0], 8
    // Predicated region
    $region2: #{reverse.1} parent=1 // pred_check
      _
    $region3: #{reverse.1} parent=1 // pred_check_branch
      %4 = sbr.rel (0) target = $region5
    $region4: #{reverse.1} parent=1 // pred_region
      // Predicated region
      $region6: #{reverse.1} parent=4 // pred_check
        _
      $region7: #{reverse.1} parent=4 // pred_check_branch
        %6 = sbr.rel (0) target = $region9
      $region8: #{reverse.1} parent=4 // pred_region
        // Predicated region
        $region21: #{reverse.1} parent=8 // pred_check
          _
        $region22: #{reverse.1} parent=8 // pred_check_branch
          %35 = sbr.rel (0) target = $region24
        $region23: #{reverse.1} parent=8 // pred_region
          loop: start=0, step=1, limit=1
          $region25: #{reverse.1} parent=23 // loop_pre_header
            _
          $region26: #{reverse.1} parent=23 // loop_header
            %s37 = sphi 0, %s41
            %p38 = scmp.ge.s32.totalorder %s37, 1
            %s42 = sphi %s0, %s0
            %s43 = sphi %s2, %s2
          $region27: #{reverse.1} parent=23 // loop_header_branch
            %40 = sbr.rel (%p38) target = $region31
          $region28: #{reverse.1} parent=23 // loop_body
            %v44 = vld [vmem:[%s42] sm:$0xff]
            %45 = vst [vmem:[%s43] sm:$0xff] %v44
            %v46 = vld [vmem:[%s42 + $0x8] sm:$0xff]
            %47 = vst [vmem:[%s43 + $0x10] sm:$0xff] %v46
            %v48 = vld [vmem:[%s42 + $0x10] sm:$0xff]
            %49 = vst [vmem:[%s43 + $0x20] sm:$0xff] %v48
            %v50 = vld [vmem:[%s42 + $0x18] sm:$0xff]
            %51 = vst [vmem:[%s43 + $0x30] sm:$0xff] %v50
            %v52 = vld [vmem:[%s42 + $0x20] sm:$0xff]
            %53 = vst [vmem:[%s43 + $0x40] sm:$0xff] %v52
            %v54 = vld [vmem:[%s42 + $0x28] sm:$0xff]
            %55 = vst [vmem:[%s43 + $0x50] sm:$0xff] %v54
            %v56 = vld [vmem:[%s42 + $0x30] sm:$0xff]
            %57 = vst [vmem:[%s43 + $0x60] sm:$0xff] %v56
            %v58 = vld [vmem:[%s42 + $0x38] sm:$0xff]
            %59 = vst [vmem:[%s43 + $0x70] sm:$0xff] %v58
          $region29: #{reverse.1} parent=23 // loop_footer
            %s41 = sadd.s32 1, %s37
          $region30: #{reverse.1} parent=23 // loop_footer_branch
            %36 = sbr.rel target = $region26
          $region31: #{reverse.1} parent=23 // loop_exit
            _
        $region24: #{reverse.1} parent=8 // pred_fallthru
          _
        // Predicated region
        $region32: #{reverse.1} parent=8 // pred_check
          _
        $region33: #{reverse.1} parent=8 // pred_check_branch
          %61 = sbr.rel target = $region35
        $region34: #{reverse.1} parent=8 // pred_region
          _
        $region35: #{reverse.1} parent=8 // pred_fallthru
          _
      $region9: #{reverse.1} parent=4 // pred_fallthru
        _
      // Predicated region
      $region10: #{reverse.1} parent=4 // pred_check
        _
      $region11: #{reverse.1} parent=4 // pred_check_branch
        %8 = sbr.rel target = $region13
      $region12: #{reverse.1} parent=4 // pred_region
        loop: start=0, step=1, limit=1
        $region14: #{reverse.1} parent=12 // loop_pre_header
          _
        $region15: #{reverse.1} parent=12 // loop_header
          %s11 = sphi 0, %s15
          %p12 = scmp.ge.s32.totalorder %s11, 1
          %s16 = sphi %s0, %s0
          %s17 = sphi %s2, %s2
        $region16: #{reverse.1} parent=12 // loop_header_branch
          %14 = sbr.rel (%p12) target = $region20
        $region17: #{reverse.1} parent=12 // loop_body
          %v18 = vld [vmem:[%s16] sm:$0xff]
          %19 = vst [vmem:[%s17] sm:$0xff] %v18
          %v20 = vld [vmem:[%s16 + $0x8] sm:$0xff]
          %21 = vst [vmem:[%s17 + $0x10] sm:$0xff] %v20
          %v22 = vld [vmem:[%s16 + $0x10] sm:$0xff]
          %23 = vst [vmem:[%s17 + $0x20] sm:$0xff] %v22
          %v24 = vld [vmem:[%s16 + $0x18] sm:$0xff]
          %25 = vst [vmem:[%s17 + $0x30] sm:$0xff] %v24
          %v26 = vld [vmem:[%s16 + $0x20] sm:$0xff]
          %27 = vst [vmem:[%s17 + $0x40] sm:$0xff] %v26
          %v28 = vld [vmem:[%s16 + $0x28] sm:$0xff]
          %29 = vst [vmem:[%s17 + $0x50] sm:$0xff] %v28
          %v30 = vld [vmem:[%s16 + $0x30] sm:$0xff]
          %31 = vst [vmem:[%s17 + $0x60] sm:$0xff] %v30
          %v32 = vld [vmem:[%s16 + $0x38] sm:$0xff]
          %33 = vst [vmem:[%s17 + $0x70] sm:$0xff] %v32
        $region18: #{reverse.1} parent=12 // loop_footer
          %s15 = sadd.s32 1, %s11
        $region19: #{reverse.1} parent=12 // loop_footer_branch
          %10 = sbr.rel target = $region15
        $region20: #{reverse.1} parent=12 // loop_exit
          _
      $region13: #{reverse.1} parent=4 // pred_fallthru
        _
    $region5: #{reverse.1} parent=1 // pred_fallthru
      _
    %62 = vnop
    %s63 = scalar_lea.vmem [#allocation0], 7
    %v64 = vld [vmem:[%s63] ss:$-1 sm:$0xff]
    %v65 = vrot.slane %v64, 1
    %66 = vst [vmem:[#allocation1] sm:$0xff] %v65
    %s67 = scalar_lea.vmem [#allocation0], 8
    %s68 = scalar_lea.vmem %s67, 7 [#allocation0]
    %v69 = vld [vmem:[%s68] ss:$-1 sm:$0xff]
    %v70 = vrot.slane %v69, 1
    %v71 = vlaneseq
    %v72 = vshrl.u32 %v71, 7
    %vm73 = vcmp.lt.s32.totalorder %v72, 7
    %74 = vst.msk [vmem:[#allocation1] sm:$0xff] %vm73, %v70
    %s75 = scalar_lea.vmem [#allocation1], 8
    %s76 = scalar_lea.vmem [#allocation0], 16
    %s77 = scalar_lea.vmem %s76, 7 [#allocation0]
    %v78 = vld [vmem:[%s77] ss:$-1 sm:$0xff]
    %v79 = vrot.slane %v78, 1
    %80 = vst [vmem:[%s75] sm:$0xff] %v79
    %s81 = scalar_lea.vmem %s76, 8 [#allocation0]
    %s82 = scalar_lea.vmem %s81, 7 [#allocation0]
    %v83 = vld [vmem:[%s82] ss:$-1 sm:$0xff]
    %v84 = vrot.slane %v83, 1
    %v85 = vlaneseq
    %v86 = vshrl.u32 %v85, 7
    %vm87 = vcmp.lt.s32.totalorder %v86, 7
    %88 = vst.msk [vmem:[%s75] sm:$0xff] %vm87, %v84
    %s89 = scalar_lea.vmem [#allocation1], 16
    %s90 = scalar_lea.vmem [#allocation0], 32
    %s91 = scalar_lea.vmem %s90, 7 [#allocation0]
    %v92 = vld [vmem:[%s91] ss:$-1 sm:$0xff]
    %v93 = vrot.slane %v92, 1
    %94 = vst [vmem:[%s89] sm:$0xff] %v93
    %s95 = scalar_lea.vmem %s90, 8 [#allocation0]
    %s96 = scalar_lea.vmem %s95, 7 [#allocation0]
    %v97 = vld [vmem:[%s96] ss:$-1 sm:$0xff]
    %v98 = vrot.slane %v97, 1
    %v99 = vlaneseq
    %v100 = vshrl.u32 %v99, 7
    %vm101 = vcmp.lt.s32.totalorder %v100, 7
    %102 = vst.msk [vmem:[%s89] sm:$0xff] %vm101, %v98
    %s103 = scalar_lea.vmem [#allocation1], 24
    %s104 = scalar_lea.vmem [#allocation0], 48
    %s105 = scalar_lea.vmem %s104, 7 [#allocation0]
    %v106 = vld [vmem:[%s105] ss:$-1 sm:$0xff]
    %v107 = vrot.slane %v106, 1
    %108 = vst [vmem:[%s103] sm:$0xff] %v107
    %s109 = scalar_lea.vmem %s104, 8 [#allocation0]
    %s110 = scalar_lea.vmem %s109, 7 [#allocation0]
    %v111 = vld [vmem:[%s110] ss:$-1 sm:$0xff]
    %v112 = vrot.slane %v111, 1
    %v113 = vlaneseq
    %v114 = vshrl.u32 %v113, 7
    %vm115 = vcmp.lt.s32.totalorder %v114, 7
    %116 = vst.msk [vmem:[%s103] sm:$0xff] %vm115, %v112
    %s117 = scalar_lea.vmem [#allocation1], 32
    %s118 = scalar_lea.vmem [#allocation0], 64
    %s119 = scalar_lea.vmem %s118, 7 [#allocation0]
    %v120 = vld [vmem:[%s119] ss:$-1 sm:$0xff]
    %v121 = vrot.slane %v120, 1
    %122 = vst [vmem:[%s117] sm:$0xff] %v121
    %s123 = scalar_lea.vmem %s118, 8 [#allocation0]
    %s124 = scalar_lea.vmem %s123, 7 [#allocation0]
    %v125 = vld [vmem:[%s124] ss:$-1 sm:$0xff]
    %v126 = vrot.slane %v125, 1
    %v127 = vlaneseq
    %v128 = vshrl.u32 %v127, 7
    %vm129 = vcmp.lt.s32.totalorder %v128, 7
    %130 = vst.msk [vmem:[%s117] sm:$0xff] %vm129, %v126
    %s131 = scalar_lea.vmem [#allocation1], 40
    %s132 = scalar_lea.vmem [#allocation0], 80
    %s133 = scalar_lea.vmem %s132, 7 [#allocation0]
    %v134 = vld [vmem:[%s133] ss:$-1 sm:$0xff]
    %v135 = vrot.slane %v134, 1
    %136 = vst [vmem:[%s131] sm:$0xff] %v135
    %s137 = scalar_lea.vmem %s132, 8 [#allocation0]
    %s138 = scalar_lea.vmem %s137, 7 [#allocation0]
    %v139 = vld [vmem:[%s138] ss:$-1 sm:$0xff]
    %v140 = vrot.slane %v139, 1
    %v141 = vlaneseq
    %v142 = vshrl.u32 %v141, 7
    %vm143 = vcmp.lt.s32.totalorder %v142, 7
    %144 = vst.msk [vmem:[%s131] sm:$0xff] %vm143, %v140
    %s145 = scalar_lea.vmem [#allocation1], 48
    %s146 = scalar_lea.vmem [#allocation0], 96
    %s147 = scalar_lea.vmem %s146, 7 [#allocation0]
    %v148 = vld [vmem:[%s147] ss:$-1 sm:$0xff]
    %v149 = vrot.slane %v148, 1
    %150 = vst [vmem:[%s145] sm:$0xff] %v149
    %s151 = scalar_lea.vmem %s146, 8 [#allocation0]
    %s152 = scalar_lea.vmem %s151, 7 [#allocation0]
    %v153 = vld [vmem:[%s152] ss:$-1 sm:$0xff]
    %v154 = vrot.slane %v153, 1
    %v155 = vlaneseq
    %v156 = vshrl.u32 %v155, 7
    %vm157 = vcmp.lt.s32.totalorder %v156, 7
    %158 = vst.msk [vmem:[%s145] sm:$0xff] %vm157, %v154
    %s159 = scalar_lea.vmem [#allocation1], 56
    %s160 = scalar_lea.vmem [#allocation0], 112
    %s161 = scalar_lea.vmem %s160, 7 [#allocation0]
    %v162 = vld [vmem:[%s161] ss:$-1 sm:$0xff]
    %v163 = vrot.slane %v162, 1
    %164 = vst [vmem:[%s159] sm:$0xff] %v163
    %s165 = scalar_lea.vmem %s160, 8 [#allocation0]
    %s166 = scalar_lea.vmem %s165, 7 [#allocation0]
    %v167 = vld [vmem:[%s166] ss:$-1 sm:$0xff]
    %v168 = vrot.slane %v167, 1
    %v169 = vlaneseq
    %v170 = vshrl.u32 %v169, 7
    %vm171 = vcmp.lt.s32.totalorder %v170, 7
    %172 = vst.msk [vmem:[%s159] sm:$0xff] %vm171, %v168
    // Predicated region
    $region36: #{reverse.1} parent=1 // pred_check
      _
    $region37: #{reverse.1} parent=1 // pred_check_branch
      %174 = sbr.rel (0) target = $region39
    $region38: #{reverse.1} parent=1 // pred_region
      // Predicated region
      $region40: #{reverse.1} parent=38 // pred_check
        _
      $region41: #{reverse.1} parent=38 // pred_check_branch
        %176 = sbr.rel (0) target = $region43
      $region42: #{reverse.1} parent=38 // pred_region
        // Predicated region
        $region55: #{reverse.1} parent=42 // pred_check
          _
        $region56: #{reverse.1} parent=42 // pred_check_branch
          %205 = sbr.rel (0) target = $region58
        $region57: #{reverse.1} parent=42 // pred_region
          loop: start=0, step=1, limit=1
          $region59: #{reverse.1} parent=57 // loop_pre_header
            _
          $region60: #{reverse.1} parent=57 // loop_header
            %s207 = sphi 0, %s211
            %p208 = scmp.ge.s32.totalorder %s207, 1
            %s212 = sphi [#allocation1], [#allocation1]
            %s213 = sphi %s1, %s1
          $region61: #{reverse.1} parent=57 // loop_header_branch
            %210 = sbr.rel (%p208) target = $region65
          $region62: #{reverse.1} parent=57 // loop_body
            %v214 = vld [vmem:[%s212] sm:$0xff]
            %215 = vst [vmem:[%s213] sm:$0xff] %v214
            %v216 = vld [vmem:[%s212 + $0x8] sm:$0xff]
            %217 = vst [vmem:[%s213 + $0x8] sm:$0xff] %v216
            %v218 = vld [vmem:[%s212 + $0x10] sm:$0xff]
            %219 = vst [vmem:[%s213 + $0x10] sm:$0xff] %v218
            %v220 = vld [vmem:[%s212 + $0x18] sm:$0xff]
            %221 = vst [vmem:[%s213 + $0x18] sm:$0xff] %v220
            %v222 = vld [vmem:[%s212 + $0x20] sm:$0xff]
            %223 = vst [vmem:[%s213 + $0x20] sm:$0xff] %v222
            %v224 = vld [vmem:[%s212 + $0x28] sm:$0xff]
            %225 = vst [vmem:[%s213 + $0x28] sm:$0xff] %v224
            %v226 = vld [vmem:[%s212 + $0x30] sm:$0xff]
            %227 = vst [vmem:[%s213 + $0x30] sm:$0xff] %v226
            %v228 = vld [vmem:[%s212 + $0x38] sm:$0xff]
            %229 = vst [vmem:[%s213 + $0x38] sm:$0xff] %v228
          $region63: #{reverse.1} parent=57 // loop_footer
            %s211 = sadd.s32 1, %s207
          $region64: #{reverse.1} parent=57 // loop_footer_branch
            %206 = sbr.rel target = $region60
          $region65: #{reverse.1} parent=57 // loop_exit
            _
        $region58: #{reverse.1} parent=42 // pred_fallthru
          _
        // Predicated region
        $region66: #{reverse.1} parent=42 // pred_check
          _
        $region67: #{reverse.1} parent=42 // pred_check_branch
          %231 = sbr.rel target = $region69
        $region68: #{reverse.1} parent=42 // pred_region
          _
        $region69: #{reverse.1} parent=42 // pred_fallthru
          _
      $region43: #{reverse.1} parent=38 // pred_fallthru
        _
      // Predicated region
      $region44: #{reverse.1} parent=38 // pred_check
        _
      $region45: #{reverse.1} parent=38 // pred_check_branch
        %178 = sbr.rel target = $region47
      $region46: #{reverse.1} parent=38 // pred_region
        loop: start=0, step=1, limit=1
        $region48: #{reverse.1} parent=46 // loop_pre_header
          _
        $region49: #{reverse.1} parent=46 // loop_header
          %s181 = sphi 0, %s185
          %p182 = scmp.ge.s32.totalorder %s181, 1
          %s186 = sphi [#allocation1], [#allocation1]
          %s187 = sphi %s1, %s1
        $region50: #{reverse.1} parent=46 // loop_header_branch
          %184 = sbr.rel (%p182) target = $region54
        $region51: #{reverse.1} parent=46 // loop_body
          %v188 = vld [vmem:[%s186] sm:$0xff]
          %189 = vst [vmem:[%s187] sm:$0xff] %v188
          %v190 = vld [vmem:[%s186 + $0x8] sm:$0xff]
          %191 = vst [vmem:[%s187 + $0x8] sm:$0xff] %v190
          %v192 = vld [vmem:[%s186 + $0x10] sm:$0xff]
          %193 = vst [vmem:[%s187 + $0x10] sm:$0xff] %v192
          %v194 = vld [vmem:[%s186 + $0x18] sm:$0xff]
          %195 = vst [vmem:[%s187 + $0x18] sm:$0xff] %v194
          %v196 = vld [vmem:[%s186 + $0x20] sm:$0xff]
          %197 = vst [vmem:[%s187 + $0x20] sm:$0xff] %v196
          %v198 = vld [vmem:[%s186 + $0x28] sm:$0xff]
          %199 = vst [vmem:[%s187 + $0x28] sm:$0xff] %v198
          %v200 = vld [vmem:[%s186 + $0x30] sm:$0xff]
          %201 = vst [vmem:[%s187 + $0x30] sm:$0xff] %v200
          %v202 = vld [vmem:[%s186 + $0x38] sm:$0xff]
          %203 = vst [vmem:[%s187 + $0x38] sm:$0xff] %v202
        $region52: #{reverse.1} parent=46 // loop_footer
          %s185 = sadd.s32 1, %s181
        $region53: #{reverse.1} parent=46 // loop_footer_branch
          %180 = sbr.rel target = $region49
        $region54: #{reverse.1} parent=46 // loop_exit
          _
      $region47: #{reverse.1} parent=38 // pred_fallthru
        _
    $region39: #{reverse.1} parent=1 // pred_fallthru
      _
    %232 = vnop

// kernel: spectral_conv2d.1
$region0: #{spectral_conv2d.1}
  #allocation0 [shape = 'u32[]', space=smem, size = 0x4, offset = 0x4, fixed_abs, tag = 'smem constant byte address 0x4 - core index']
  #allocation1 [shape = 'u32[144,128]{1,0:T(1,128)}', space=vmem, size = 0x12000, scoped, tag = 'internal scratch']
  %s0 = inlined_call_operand.vmem [shape: bf16[32,8,8], index: 0, kind: input, shape index: {}]
  %s1 = inlined_call_operand.vmem [shape: bf16[32,8,8], index: 1, kind: input, shape index: {}]
  %s2 = inlined_call_operand.vmem [shape: f32[32,2,8], index: 2, kind: output, shape index: {}]
  %s3 = sld [smem:[#allocation0]]
  $region41: #{spectral_conv2d.1} parent=0
    _
  %s5 = ssub.s32 1, %s3
  %s6 = scalar_select 0, %s5, %s3
  loop: start=0, step=1, limit=6
  $region2: #{spectral_conv2d.1} parent=0 // loop_pre_header
    _
  $region3: #{spectral_conv2d.1} parent=0 // loop_header
    %s8 = sphi 0, %s12
    %p9 = scmp.ge.s32.totalorder %s8, 6
    %s18 = sphi 0, %s20
    %s21 = sphi 0, %s18
    %s22 = sphi 0, %s21
    %s38 = sphi 0, %s22
    %s44 = sphi 0, %s46
    %s47 = sphi 0, %s44
    %s48 = sphi 0, %s47
    %s64 = sphi 0, %s48
    %s70 = sphi 0, %s72
    %s73 = sphi 0, %s70
    %s74 = sphi 0, %s73
    %s90 = sphi 0, %s74
  $region4: #{spectral_conv2d.1} parent=0 // loop_header_branch
    %11 = sbr.rel (%p9) target = $region8
  $region5: #{spectral_conv2d.1} parent=0 // loop_body
    %s13 = ssub.s32 %s8, 1
    %s14 = ssub.s32 %s8, 2
    %s15 = sadd.s32 %s8, 1
    %s16 = ssub.s32 %s8, %s15
    %p17 = scmp.eq.s32.totalorder %s16, 0
    %s19 = sadd.s32 %s18, 1
    %s20 = scalar_select %p17, %s18, %s19
    %p23 = pneg %p17
    %p24 = scmp.eq.s32.totalorder %s8, 3
    %p25 = por %p23, %p24
    %p26 = scmp.ne.s32.totalorder %s18, %s21
    %p27 = scmp.eq.s32.totalorder %s8, 0
    %p28 = por %p26, %p27
    %p29 = scmp.ne.s32.totalorder %s18, %s21
    %p30 = scmp.eq.s32.totalorder %s13, 3
    %p31 = por %p29, %p30
    %p32 = scmp.ne.s32.totalorder %s21, %s22
    %p33 = scmp.eq.s32.totalorder %s13, 0
    %p34 = por %p32, %p33
    %p35 = scmp.ne.s32.totalorder %s21, %s22
    %p36 = scmp.eq.s32.totalorder %s14, 3
    %p37 = por %p35, %p36
    %p39 = scmp.ne.s32.totalorder %s22, %s38
    %p40 = scmp.eq.s32.totalorder %s14, 0
    %p41 = por %p39, %p40
    %s42 = ssub.s32 %s8, %s15
    %p43 = scmp.eq.s32.totalorder %s42, 0
    %s45 = sadd.s32 %s44, 1
    %s46 = scalar_select %p43, %s44, %s45
    %p49 = pneg %p43
    %p50 = scmp.eq.s32.totalorder %s8, 3
    %p51 = por %p49, %p50
    %p52 = scmp.ne.s32.totalorder %s44, %s47
    %p53 = scmp.eq.s32.totalorder %s8, 0
    %p54 = por %p52, %p53
    %p55 = scmp.ne.s32.totalorder %s44, %s47
    %p56 = scmp.eq.s32.totalorder %s13, 3
    %p57 = por %p55, %p56
    %p58 = scmp.ne.s32.totalorder %s47, %s48
    %p59 = scmp.eq.s32.totalorder %s13, 0
    %p60 = por %p58, %p59
    %p61 = scmp.ne.s32.totalorder %s47, %s48
    %p62 = scmp.eq.s32.totalorder %s14, 3
    %p63 = por %p61, %p62
    %p65 = scmp.ne.s32.totalorder %s48, %s64
    %p66 = scmp.eq.s32.totalorder %s14, 0
    %p67 = por %p65, %p66
    %s68 = ssub.s32 %s8, %s15
    %p69 = scmp.eq.s32.totalorder %s68, 0
    %s71 = sadd.s32 %s70, 1
    %s72 = scalar_select %p69, %s70, %s71
    %p75 = pneg %p69
    %p76 = scmp.eq.s32.totalorder %s8, 3
    %p77 = por %p75, %p76
    %p78 = scmp.ne.s32.totalorder %s70, %s73
    %p79 = scmp.eq.s32.totalorder %s8, 0
    %p80 = por %p78, %p79
    %p81 = scmp.ne.s32.totalorder %s70, %s73
    %p82 = scmp.eq.s32.totalorder %s13, 3
    %p83 = por %p81, %p82
    %p84 = scmp.ne.s32.totalorder %s73, %s74
    %p85 = scmp.eq.s32.totalorder %s13, 0
    %p86 = por %p84, %p85
    %p87 = scmp.ne.s32.totalorder %s73, %s74
    %p88 = scmp.eq.s32.totalorder %s14, 3
    %p89 = por %p87, %p88
    %p91 = scmp.ne.s32.totalorder %s74, %s90
    %p92 = scmp.eq.s32.totalorder %s14, 0
    %p93 = por %p91, %p92
    %p94 = scmp.le.s32.totalorder 1, %s8
    %p95 = scmp.lt.s32.totalorder %s8, 5
    %p96 = pnand %p94, %p95
    %p97 = pneg %p96
    // Predicated region
    $region9: #{spectral_conv2d.1} parent=5 // pred_check
      _
    $region10: #{spectral_conv2d.1} parent=5 // pred_check_branch
      %99 = sbr.rel (%p96) target = $region12
    $region11: #{spectral_conv2d.1} parent=5 // pred_region
      %s100 = ssub.s32 %s8, 1
    $region12: #{spectral_conv2d.1} parent=5 // pred_fallthru
      _
    %p101 = scmp.lt.s32.totalorder %s8, 4
    // Predicated region
    $region13: #{spectral_conv2d.1} parent=5 // pred_check
      %p102 = pneg %p101
    $region14: #{spectral_conv2d.1} parent=5 // pred_check_branch
      %104 = sbr.rel (%p102) target = $region16
    $region15: #{spectral_conv2d.1} parent=5 // pred_region
      // Predicated region
      $region17: #{spectral_conv2d.1} parent=15 // pred_check
        %p105 = pneg %p28
      $region18: #{spectral_conv2d.1} parent=15 // pred_check_branch
        %107 = sbr.rel (%p105) target = $region20
      $region19: #{spectral_conv2d.1} parent=15 // pred_region
        %s108 = smul.u32 8, %s8
        %p109 = scmp.lt.s32.totalorder %s108, 31
        %s110 = scalar_select %p109, %s108, 31
        %s111 = smul.addr %s110, 4
        %s112 = scalar_lea.vmem %s0, %s111
        %s113 = smul.u32 8, %s8
      $region20: #{spectral_conv2d.1} parent=15 // pred_fallthru
        _
      // Predicated region
      $region21: #{spectral_conv2d.1} parent=15 // pred_check
        %p114 = pneg %p54
      $region22: #{spectral_conv2d.1} parent=15 // pred_check_branch
        %116 = sbr.rel (%p114) target = $region24
      $region23: #{spectral_conv2d.1} parent=15 // pred_region
        %s117 = smul.u32 8, %s8
        %p118 = scmp.lt.s32.totalorder %s117, 31
        %s119 = scalar_select %p118, %s117, 31
        %s120 = smul.addr %s119, 4
        %s121 = scalar_lea.vmem %s1, %s120
        %s122 = smul.u32 8, %s8
      $region24: #{spectral_conv2d.1} parent=15 // pred_fallthru
        _
    $region16: #{spectral_conv2d.1} parent=5 // pred_fallthru
      _
    %p123 = scmp.le.s32.totalorder 1, %s8
    %p124 = scmp.lt.s32.totalorder %s8, 5
    %p125 = pnand %p123, %p124
    %p126 = pneg %p125
    // Predicated region
    $region25: #{spectral_conv2d.1} parent=5 // pred_check
      _
    $region26: #{spectral_conv2d.1} parent=5 // pred_check_branch
      %128 = sbr.rel (%p125) target = $region28
    $region27: #{spectral_conv2d.1} parent=5 // pred_region
      %s129 = ssub.s32 %s8, 1
      %s130 = smul.u32 8, %s13
      %p131 = scmp.lt.s32.totalorder %s130, 31
      %s132 = scalar_select %p131, %s130, 31
      %s133 = smul.addr %s132, 4
      %s134 = scalar_lea.vmem %s0, %s133
      %p135 = pneg %p34
      %p136 = pneg %p31
      %s137 = smul.u32 8, %s13
      %p138 = scmp.lt.s32.totalorder %s137, 31
      %s139 = scalar_select %p138, %s137, 31
      %s140 = smul.addr %s139, 4
      %s141 = scalar_lea.vmem %s1, %s140
      %p142 = pneg %p60
      %p143 = pneg %p57
      %p144 = pneg %p86
      %p145 = pneg %p83
      %s146 = smul.u32 8, %s13
      %p147 = scmp.lt.s32.totalorder %s146, 31
      %s148 = scalar_select %p147, %s146, 31
      %s149 = smul.addr %s148, 2
      %s150 = scalar_lea.vmem %s2, %s149
      %s151 = smul.u32 8, %s13
      %p152 = scmp.lt.s32.totalorder %s151, 31
      %s153 = scalar_select %p152, %s151, 31
      %s154 = smul.addr %s153, 4
      %s155 = scalar_lea.vmem %s0, %s154
      %s156 = smul.u32 8, %s13
      %s157 = smul.u32 8, %s13
      %p158 = scmp.lt.s32.totalorder %s157, 31
      %s159 = scalar_select %p158, %s157, 31
      %s160 = smul.addr %s159, 4
      %s161 = scalar_lea.vmem %s1, %s160
      %s162 = smul.u32 8, %s13
      %s163 = smul.u32 8, %s13
      %p164 = scmp.lt.s32.totalorder %s163, 31
      %s165 = scalar_select %p164, %s163, 31
      %s166 = smul.addr %s165, 2
      %s167 = scalar_lea.vmem %s2, %s166
      %s168 = smul.u32 8, %s13
      %v170 = vld [vmem:[%s155] sm:$0xf]
      %v171 = vld [vmem:[%s155 + $0x4] sm:$0xf]
      %v172 = vld [vmem:[%s155 + $0x8] sm:$0xf]
      %v173 = vld [vmem:[%s155 + $0xc] sm:$0xf]
      %v174 = vld [vmem:[%s155 + $0x10] sm:$0xf]
      %v175 = vld [vmem:[%s155 + $0x14] sm:$0xf]
      %v176 = vld [vmem:[%s155 + $0x18] sm:$0xf]
      %v177 = vld [vmem:[%s155 + $0x1c] sm:$0xf]
      %v178 = vld [vmem:[%s161] sm:$0xf]
      %v179 = vld [vmem:[%s161 + $0x4] sm:$0xf]
      %v180 = vld [vmem:[%s161 + $0x8] sm:$0xf]
      %v181 = vld [vmem:[%s161 + $0xc] sm:$0xf]
      %v182 = vld [vmem:[%s161 + $0x10] sm:$0xf]
      %v183 = vld [vmem:[%s161 + $0x14] sm:$0xf]
      %v184 = vld [vmem:[%s161 + $0x18] sm:$0xf]
      %v185 = vld [vmem:[%s161 + $0x1c] sm:$0xf]
      %vm186 = vcmask 64512
      %v188 = vsel %vm186, %v170, 0
      %vm190 = vcmask 1043456
      %v192 = vsel %vm190, %v178, 0
      %194 = vmatprep.subr.bf16.mxu0 0
      %195 = vmatpush1.bf16.msra.mxu0 %v192
      %196 = vmatprep.subr.bf16.mxu0 0
      %197 = vmatpush1.bf16.msra.mxu0 0
      %198 = vmatprep.subr.bf16.mxu0 0
      %199 = vmatpush1.bf16.msra.mxu0 0
      %200 = vmatprep.subr.bf16.mxu0 0
      %201 = vmatpush1.bf16.msra.mxu0 0
      %202 = vmatprep.subr.bf16.mxu0 0
      %203 = vmatpush1.bf16.msra.mxu0 0
      %204 = vmatprep.subr.bf16.mxu0 0
      %205 = vmatpush1.bf16.msra.mxu0 0
      %206 = vmatprep.subr.bf16.mxu0 0
      %207 = vmatpush1.bf16.msra.mxu0 0
      %208 = vmatprep.subr.bf16.mxu0 0
      %209 = vmatpush1.bf16.msra.mxu0 0
      %210 = vmatprep.subr.bf16.mxu0 0
      %211 = vmatpush1.bf16.msra.mxu0 0
      %212 = vmatprep.subr.bf16.mxu0 0
      %213 = vmatpush1.bf16.msra.mxu0 0
      %214 = vmatprep.subr.bf16.mxu0 0
      %215 = vmatpush1.bf16.msra.mxu0 0
      %216 = vmatprep.subr.bf16.mxu0 0
      %217 = vmatpush1.bf16.msra.mxu0 0
      %218 = vmatprep.subr.bf16.mxu0 0
      %219 = vmatpush1.bf16.msra.mxu0 0
      %220 = vmatprep.subr.bf16.mxu0 0
      %221 = vmatpush1.bf16.msra.mxu0 0
      %222 = vmatprep.subr.bf16.mxu0 0
      %223 = vmatpush1.bf16.msra.mxu0 0
      %224 = vmatprep.subr.bf16.mxu0 0
      %225 = vmatpush1.bf16.msra.mxu0 0
      %226 = vmatprep.mubr.bf16.mxu0 0
      %227 = vmatmul.mubr.bf16.gmra.mrb[0].mxu0 %v188
      %v228 = vpop.f32.mrb[0].mxu0
      %v229 = vadd.f32 0.0, %v228
      %v230 = vpop.f32.mrb[0].mxu0
      %v231 = vpop.f32.mrb[0].mxu0
      %v232 = vpop.f32.mrb[0].mxu0
      %233 = vdwg.mxu0
      %v235 = vsel %vm186, %v171, 0
      %v238 = vsel %vm190, %v179, 0
      %240 = vmatprep.subr.bf16.mxu0 0
      %241 = vmatpush1.bf16.msra.mxu0 %v238
      %242 = vmatprep.subr.bf16.mxu0 0
      %243 = vmatpush1.bf16.msra.mxu0 0
      %244 = vmatprep.subr.bf16.mxu0 0
      %245 = vmatpush1.bf16.msra.mxu0 0
      %246 = vmatprep.subr.bf16.mxu0 0
      %247 = vmatpush1.bf16.msra.mxu0 0
      %248 = vmatprep.subr.bf16.mxu0 0
      %249 = vmatpush1.bf16.msra.mxu0 0
      %250 = vmatprep.subr.bf16.mxu0 0
      %251 = vmatpush1.bf16.msra.mxu0 0
      %252 = vmatprep.subr.bf16.mxu0 0
      %253 = vmatpush1.bf16.msra.mxu0 0
      %254 = vmatprep.subr.bf16.mxu0 0
      %255 = vmatpush1.bf16.msra.mxu0 0
      %256 = vmatprep.subr.bf16.mxu0 0
      %257 = vmatpush1.bf16.msra.mxu0 0
      %258 = vmatprep.subr.bf16.mxu0 0
      %259 = vmatpush1.bf16.msra.mxu0 0
      %260 = vmatprep.subr.bf16.mxu0 0
      %261 = vmatpush1.bf16.msra.mxu0 0
      %262 = vmatprep.subr.bf16.mxu0 0
      %263 = vmatpush1.bf16.msra.mxu0 0
      %264 = vmatprep.subr.bf16.mxu0 0
      %265 = vmatpush1.bf16.msra.mxu0 0
      %266 = vmatprep.subr.bf16.mxu0 0
      %267 = vmatpush1.bf16.msra.mxu0 0
      %268 = vmatprep.subr.bf16.mxu0 0
      %269 = vmatpush1.bf16.msra.mxu0 0
      %270 = vmatprep.subr.bf16.mxu0 0
      %271 = vmatpush1.bf16.msra.mxu0 0
      %272 = vmatprep.mubr.bf16.mxu0 0
      %273 = vmatmul.mubr.bf16.gmra.mrb[0].mxu0 %v235
      %v274 = vpop.f32.mrb[0].mxu0
      %v275 = vadd.f32 0.0, %v274
      %v276 = vpop.f32.mrb[0].mxu0
      %v277 = vpop.f32.mrb[0].mxu0
      %v278 = vpop.f32.mrb[0].mxu0
      %279 = vdwg.mxu0
      %v281 = vsel %vm186, %v172, 0
      %v284 = vsel %vm190, %v180, 0
      %286 = vmatprep.subr.bf16.mxu0 0
      %287 = vmatpush1.bf16.msra.mxu0 %v284
      %288 = vmatprep.subr.bf16.mxu0 0
      %289 = vmatpush1.bf16.msra.mxu0 0
      %290 = vmatprep.subr.bf16.mxu0 0
      %291 = vmatpush1.bf16.msra.mxu0 0
      %292 = vmatprep.subr.bf16.mxu0 0
      %293 = vmatpush1.bf16.msra.mxu0 0
      %294 = vmatprep.subr.bf16.mxu0 0
      %295 = vmatpush1.bf16.msra.mxu0 0
      %296 = vmatprep.subr.bf16.mxu0 0
      %297 = vmatpush1.bf16.msra.mxu0 0
      %298 = vmatprep.subr.bf16.mxu0 0
      %299 = vmatpush1.bf16.msra.mxu0 0
      %300 = vmatprep.subr.bf16.mxu0 0
      %301 = vmatpush1.bf16.msra.mxu0 0
      %302 = vmatprep.subr.bf16.mxu0 0
      %303 = vmatpush1.bf16.msra.mxu0 0
      %304 = vmatprep.subr.bf16.mxu0 0
      %305 = vmatpush1.bf16.msra.mxu0 0
      %306 = vmatprep.subr.bf16.mxu0 0
      %307 = vmatpush1.bf16.msra.mxu0 0
      %308 = vmatprep.subr.bf16.mxu0 0
      %309 = vmatpush1.bf16.msra.mxu0 0
      %310 = vmatprep.subr.bf16.mxu0 0
      %311 = vmatpush1.bf16.msra.mxu0 0
      %312 = vmatprep.subr.bf16.mxu0 0
      %313 = vmatpush1.bf16.msra.mxu0 0
      %314 = vmatprep.subr.bf16.mxu0 0
      %315 = vmatpush1.bf16.msra.mxu0 0
      %316 = vmatprep.subr.bf16.mxu0 0
      %317 = vmatpush1.bf16.msra.mxu0 0
      %318 = vmatprep.mubr.bf16.mxu0 0
      %319 = vmatmul.mubr.bf16.gmra.mrb[0].mxu0 %v281
      %v320 = vpop.f32.mrb[0].mxu0
      %v321 = vadd.f32 0.0, %v320
      %v322 = vpop.f32.mrb[0].mxu0
      %v323 = vpop.f32.mrb[0].mxu0
      %v324 = vpop.f32.mrb[0].mxu0
      %325 = vdwg.mxu0
      %v327 = vsel %vm186, %v173, 0
      %v330 = vsel %vm190, %v181, 0
      %332 = vmatprep.subr.bf16.mxu0 0
      %333 = vmatpush1.bf16.msra.mxu0 %v330
      %334 = vmatprep.subr.bf16.mxu0 0
      %335 = vmatpush1.bf16.msra.mxu0 0
      %336 = vmatprep.subr.bf16.mxu0 0
      %337 = vmatpush1.bf16.msra.mxu0 0
      %338 = vmatprep.subr.bf16.mxu0 0
      %339 = vmatpush1.bf16.msra.mxu0 0
      %340 = vmatprep.subr.bf16.mxu0 0
      %341 = vmatpush1.bf16.msra.mxu0 0
      %342 = vmatprep.subr.bf16.mxu0 0
      %343 = vmatpush1.bf16.msra.mxu0 0
      %344 = vmatprep.subr.bf16.mxu0 0
      %345 = vmatpush1.bf16.msra.mxu0 0
      %346 = vmatprep.subr.bf16.mxu0 0
      %347 = vmatpush1.bf16.msra.mxu0 0
      %348 = vmatprep.subr.bf16.mxu0 0
      %349 = vmatpush1.bf16.msra.mxu0 0
      %350 = vmatprep.subr.bf16.mxu0 0
      %351 = vmatpush1.bf16.msra.mxu0 0
      %352 = vmatprep.subr.bf16.mxu0 0
      %353 = vmatpush1.bf16.msra.mxu0 0
      %354 = vmatprep.subr.bf16.mxu0 0
      %355 = vmatpush1.bf16.msra.mxu0 0
      %356 = vmatprep.subr.bf16.mxu0 0
      %357 = vmatpush1.bf16.msra.mxu0 0
      %358 = vmatprep.subr.bf16.mxu0 0
      %359 = vmatpush1.bf16.msra.mxu0 0
      %360 = vmatprep.subr.bf16.mxu0 0
      %361 = vmatpush1.bf16.msra.mxu0 0
      %362 = vmatprep.subr.bf16.mxu0 0
      %363 = vmatpush1.bf16.msra.mxu0 0
      %364 = vmatprep.mubr.bf16.mxu0 0
      %365 = vmatmul.mubr.bf16.gmra.mrb[0].mxu0 %v327
      %v366 = vpop.f32.mrb[0].mxu0
      %v367 = vadd.f32 0.0, %v366
      %v368 = vpop.f32.mrb[0].mxu0
      %v369 = vpop.f32.mrb[0].mxu0
      %v370 = vpop.f32.mrb[0].mxu0
      %371 = vdwg.mxu0
      %v373 = vsel %vm186, %v174, 0
      %v376 = vsel %vm190, %v182, 0
      %378 = vmatprep.subr.bf16.mxu0 0
      %379 = vmatpush1.bf16.msra.mxu0 %v376
      %380 = vmatprep.subr.bf16.mxu0 0
      %381 = vmatpush1.bf16.msra.mxu0 0
      %382 = vmatprep.subr.bf16.mxu0 0
      %383 = vmatpush1.bf16.msra.mxu0 0
      %384 = vmatprep.subr.bf16.mxu0 0
      %385 = vmatpush1.bf16.msra.mxu0 0
      %386 = vmatprep.subr.bf16.mxu0 0
      %387 = vmatpush1.bf16.msra.mxu0 0
      %388 = vmatprep.subr.bf16.mxu0 0
      %389 = vmatpush1.bf16.msra.mxu0 0
      %390 = vmatprep.subr.bf16.mxu0 0
      %391 = vmatpush1.bf16.msra.mxu0 0
      %392 = vmatprep.subr.bf16.mxu0 0
      %393 = vmatpush1.bf16.msra.mxu0 0
      %394 = vmatprep.subr.bf16.mxu0 0
      %395 = vmatpush1.bf16.msra.mxu0 0
      %396 = vmatprep.subr.bf16.mxu0 0
      %397 = vmatpush1.bf16.msra.mxu0 0
      %398 = vmatprep.subr.bf16.mxu0 0
      %399 = vmatpush1.bf16.msra.mxu0 0
      %400 = vmatprep.subr.bf16.mxu0 0
      %401 = vmatpush1.bf16.msra.mxu0 0
      %402 = vmatprep.subr.bf16.mxu0 0
      %403 = vmatpush1.bf16.msra.mxu0 0
      %404 = vmatprep.subr.bf16.mxu0 0
      %405 = vmatpush1.bf16.msra.mxu0 0
      %406 = vmatprep.subr.bf16.mxu0 0
      %407 = vmatpush1.bf16.msra.mxu0 0
      %408 = vmatprep.subr.bf16.mxu0 0
      %409 = vmatpush1.bf16.msra.mxu0 0
      %410 = vmatprep.mubr.bf16.mxu0 0
      %411 = vmatmul.mubr.bf16.gmra.mrb[0].mxu0 %v373
      %v412 = vpop.f32.mrb[0].mxu0
      %v413 = vadd.f32 0.0, %v412
      %v414 = vpop.f32.mrb[0].mxu0
      %v415 = vpop.f32.mrb[0].mxu0
      %v416 = vpop.f32.mrb[0].mxu0
      %417 = vdwg.mxu0
      %v419 = vsel %vm186, %v175, 0
      %v422 = vsel %vm190, %v183, 0
      %424 = vmatprep.subr.bf16.mxu0 0
      %425 = vmatpush1.bf16.msra.mxu0 %v422
      %426 = vmatprep.subr.bf16.mxu0 0
      %427 = vmatpush1.bf16.msra.mxu0 0
      %428 = vmatprep.subr.bf16.mxu0 0
      %429 = vmatpush1.bf16.msra.mxu0 0
      %430 = vmatprep.subr.bf16.mxu0 0
      %431 = vmatpush1.bf16.msra.mxu0 0
      %432 = vmatprep.subr.bf16.mxu0 0
      %433 = vmatpush1.bf16.msra.mxu0 0
      %434 = vmatprep.subr.bf16.mxu0 0
      %435 = vmatpush1.bf16.msra.mxu0 0
      %436 = vmatprep.subr.bf16.mxu0 0
      %437 = vmatpush1.bf16.msra.mxu0 0
      %438 = vmatprep.subr.bf16.mxu0 0
      %439 = vmatpush1.bf16.msra.mxu0 0
      %440 = vmatprep.subr.bf16.mxu0 0
      %441 = vmatpush1.bf16.msra.mxu0 0
      %442 = vmatprep.subr.bf16.mxu0 0
      %443 = vmatpush1.bf16.msra.mxu0 0
      %444 = vmatprep.subr.bf16.mxu0 0
      %445 = vmatpush1.bf16.msra.mxu0 0
      %446 = vmatprep.subr.bf16.mxu0 0
      %447 = vmatpush1.bf16.msra.mxu0 0
      %448 = vmatprep.subr.bf16.mxu0 0
      %449 = vmatpush1.bf16.msra.mxu0 0
      %450 = vmatprep.subr.bf16.mxu0 0
      %451 = vmatpush1.bf16.msra.mxu0 0
      %452 = vmatprep.subr.bf16.mxu0 0
      %453 = vmatpush1.bf16.msra.mxu0 0
      %454 = vmatprep.subr.bf16.mxu0 0
      %455 = vmatpush1.bf16.msra.mxu0 0
      %456 = vmatprep.mubr.bf16.mxu0 0
      %457 = vmatmul.mubr.bf16.gmra.mrb[0].mxu0 %v419
      %v458 = vpop.f32.mrb[0].mxu0
      %v459 = vadd.f32 0.0, %v458
      %v460 = vpop.f32.mrb[0].mxu0
      %v461 = vpop.f32.mrb[0].mxu0
      %v462 = vpop.f32.mrb[0].mxu0
      %463 = vdwg.mxu0
      %v465 = vsel %vm186, %v176, 0
      %v468 = vsel %vm190, %v184, 0
      %470 = vmatprep.subr.bf16.mxu0 0
      %471 = vmatpush1.bf16.msra.mxu0 %v468
      %472 = vmatprep.subr.bf16.mxu0 0
      %473 = vmatpush1.bf16.msra.mxu0 0
      %474 = vmatprep.subr.bf16.mxu0 0
      %475 = vmatpush1.bf16.msra.mxu0 0
      %476 = vmatprep.subr.bf16.mxu0 0
      %477 = vmatpush1.bf16.msra.mxu0 0
      %478 = vmatprep.subr.bf16.mxu0 0
      %479 = vmatpush1.bf16.msra.mxu0 0
      %480 = vmatprep.subr.bf16.mxu0 0
      %481 = vmatpush1.bf16.msra.mxu0 0
      %482 = vmatprep.subr.bf16.mxu0 0
      %483 = vmatpush1.bf16.msra.mxu0 0
      %484 = vmatprep.subr.bf16.mxu0 0
      %485 = vmatpush1.bf16.msra.mxu0 0
      %486 = vmatprep.subr.bf16.mxu0 0
      %487 = vmatpush1.bf16.msra.mxu0 0
      %488 = vmatprep.subr.bf16.mxu0 0
      %489 = vmatpush1.bf16.msra.mxu0 0
      %490 = vmatprep.subr.bf16.mxu0 0
      %491 = vmatpush1.bf16.msra.mxu0 0
      %492 = vmatprep.subr.bf16.mxu0 0
      %493 = vmatpush1.bf16.msra.mxu0 0
      %494 = vmatprep.subr.bf16.mxu0 0
      %495 = vmatpush1.bf16.msra.mxu0 0
      %496 = vmatprep.subr.bf16.mxu0 0
      %497 = vmatpush1.bf16.msra.mxu0 0
      %498 = vmatprep.subr.bf16.mxu0 0
      %499 = vmatpush1.bf16.msra.mxu0 0
      %500 = vmatprep.subr.bf16.mxu0 0
      %501 = vmatpush1.bf16.msra.mxu0 0
      %502 = vmatprep.mubr.bf16.mxu0 0
      %503 = vmatmul.mubr.bf16.gmra.mrb[0].mxu0 %v465
      %v504 = vpop.f32.mrb[0].mxu0
      %v505 = vadd.f32 0.0, %v504
      %v506 = vpop.f32.mrb[0].mxu0
      %v507 = vpop.f32.mrb[0].mxu0
      %v508 = vpop.f32.mrb[0].mxu0
      %509 = vdwg.mxu0
      %v511 = vsel %vm186, %v177, 0
      %v514 = vsel %vm190, %v185, 0
      %516 = vmatprep.subr.bf16.mxu0 0
      %517 = vmatpush1.bf16.msra.mxu0 %v514
      %518 = vmatprep.subr.bf16.mxu0 0
      %519 = vmatpush1.bf16.msra.mxu0 0
      %520 = vmatprep.subr.bf16.mxu0 0
      %521 = vmatpush1.bf16.msra.mxu0 0
      %522 = vmatprep.subr.bf16.mxu0 0
      %523 = vmatpush1.bf16.msra.mxu0 0
      %524 = vmatprep.subr.bf16.mxu0 0
      %525 = vmatpush1.bf16.msra.mxu0 0
      %526 = vmatprep.subr.bf16.mxu0 0
      %527 = vmatpush1.bf16.msra.mxu0 0
      %528 = vmatprep.subr.bf16.mxu0 0
      %529 = vmatpush1.bf16.msra.mxu0 0
      %530 = vmatprep.subr.bf16.mxu0 0
      %531 = vmatpush1.bf16.msra.mxu0 0
      %532 = vmatprep.subr.bf16.mxu0 0
      %533 = vmatpush1.bf16.msra.mxu0 0
      %534 = vmatprep.subr.bf16.mxu0 0
      %535 = vmatpush1.bf16.msra.mxu0 0
      %536 = vmatprep.subr.bf16.mxu0 0
      %537 = vmatpush1.bf16.msra.mxu0 0
      %538 = vmatprep.subr.bf16.mxu0 0
      %539 = vmatpush1.bf16.msra.mxu0 0
      %540 = vmatprep.subr.bf16.mxu0 0
      %541 = vmatpush1.bf16.msra.mxu0 0
      %542 = vmatprep.subr.bf16.mxu0 0
      %543 = vmatpush1.bf16.msra.mxu0 0
      %544 = vmatprep.subr.bf16.mxu0 0
      %545 = vmatpush1.bf16.msra.mxu0 0
      %546 = vmatprep.subr.bf16.mxu0 0
      %547 = vmatpush1.bf16.msra.mxu0 0
      %548 = vmatprep.mubr.bf16.mxu0 0
      %549 = vmatmul.mubr.bf16.gmra.mrb[0].mxu0 %v511
      %v550 = vpop.f32.mrb[0].mxu0
      %v551 = vadd.f32 0.0, %v550
      %v552 = vpop.f32.mrb[0].mxu0
      %v553 = vpop.f32.mrb[0].mxu0
      %v554 = vpop.f32.mrb[0].mxu0
      %555 = vdwg.mxu0
      %v564 = vrot.slane %v229, 2
      %v565 = vrot.slane %v275, 2
      %v566 = vrot.slane %v321, 2
      %v567 = vrot.slane %v367, 2
      %v568 = vrot.slane %v413, 2
      %v569 = vrot.slane %v459, 2
      %v570 = vrot.slane %v505, 2
      %v571 = vrot.slane %v551, 2
      %572 = vrot.lane.b32.xlu0 %v564, 124
      %v573 = vpop.permute.xlu0 %572
      %574 = vrot.lane.b32.xlu0 %v565, 124
      %v575 = vpop.permute.xlu0 %574
      %576 = vrot.lane.b32.xlu0 %v566, 124
      %v577 = vpop.permute.xlu0 %576
      %578 = vrot.lane.b32.xlu0 %v567, 124
      %v579 = vpop.permute.xlu0 %578
      %580 = vrot.lane.b32.xlu0 %v568, 124
      %v581 = vpop.permute.xlu0 %580
      %582 = vrot.lane.b32.xlu0 %v569, 124
      %v583 = vpop.permute.xlu0 %582
      %584 = vrot.lane.b32.xlu0 %v570, 124
      %v585 = vpop.permute.xlu0 %584
      %586 = vrot.lane.b32.xlu0 %v571, 124
      %v587 = vpop.permute.xlu0 %586
      %v596 = vsub.f32 %v229, %v573
      %v597 = vsub.f32 %v275, %v575
      %v598 = vsub.f32 %v321, %v577
      %v599 = vsub.f32 %v367, %v579
      %v600 = vsub.f32 %v413, %v581
      %v601 = vsub.f32 %v459, %v583
      %v602 = vsub.f32 %v505, %v585
      %v603 = vsub.f32 %v551, %v587
      %604 = vrot.lane.b32.xlu0 %v564, 4
      %v605 = vpop.permute.xlu0 %604
      %606 = vrot.lane.b32.xlu0 %v565, 4
      %v607 = vpop.permute.xlu0 %606
      %608 = vrot.lane.b32.xlu0 %v566, 4
      %v609 = vpop.permute.xlu0 %608
      %610 = vrot.lane.b32.xlu0 %v567, 4
      %v611 = vpop.permute.xlu0 %610
      %612 = vrot.lane.b32.xlu0 %v568, 4
      %v613 = vpop.permute.xlu0 %612
      %614 = vrot.lane.b32.xlu0 %v569, 4
      %v615 = vpop.permute.xlu0 %614
      %616 = vrot.lane.b32.xlu0 %v570, 4
      %v617 = vpop.permute.xlu0 %616
      %618 = vrot.lane.b32.xlu0 %v571, 4
      %v619 = vpop.permute.xlu0 %618
      %v628 = vadd.f32 %v229, %v605
      %v629 = vadd.f32 %v275, %v607
      %v630 = vadd.f32 %v321, %v609
      %v631 = vadd.f32 %v367, %v611
      %v632 = vadd.f32 %v413, %v613
      %v633 = vadd.f32 %v459, %v615
      %v634 = vadd.f32 %v505, %v617
      %v635 = vadd.f32 %v551, %v619
      %vm636 = vcmask 31744
      %v637 = vsel %vm636, %v596, %v628
      %v638 = vsel %vm636, %v597, %v629
      %v639 = vsel %vm636, %v598, %v630
      %v640 = vsel %vm636, %v599, %v631
      %v641 = vsel %vm636, %v600, %v632
      %v642 = vsel %vm636, %v601, %v633
      %v643 = vsel %vm636, %v602, %v634
      %v644 = vsel %vm636, %v603, %v635
      %vm645 = vcmask 58368
      %646 = vst.msk [vmem:[%s167] sm:$0x3] %vm645, %v637
      %647 = vst.msk [vmem:[%s167 + $0x2] sm:$0x3] %vm645, %v638
      %648 = vst.msk [vmem:[%s167 + $0x4] sm:$0x3] %vm645, %v639
      %649 = vst.msk [vmem:[%s167 + $0x6] sm:$0x3] %vm645, %v640
      %650 = vst.msk [vmem:[%s167 + $0x8] sm:$0x3] %vm645, %v641
      %651 = vst.msk [vmem:[%s167 + $0xa] sm:$0x3] %vm645, %v642
      %652 = vst.msk [vmem:[%s167 + $0xc] sm:$0x3] %vm645, %v643
      %653 = vst.msk [vmem:[%s167 + $0xe] sm:$0x3] %vm645, %v644
      %s654 = smul.u32 8, %s13
      %p655 = scmp.lt.s32.totalorder %s654, 31
      %s656 = scalar_select %p655, %s654, 31
      %s657 = smul.addr %s656, 2
      %s658 = scalar_lea.vmem %s2, %s657
      // Predicated region
      $region29: #{spectral_conv2d.1} parent=27 // pred_check
        %p659 = pneg %p83
      $region30: #{spectral_conv2d.1} parent=27 // pred_check_branch
        %661 = sbr.rel (%p659) target = $region32
      $region31: #{spectral_conv2d.1} parent=27 // pred_region
        %s662 = smul.u32 8, %s13
      $region32: #{spectral_conv2d.1} parent=27 // pred_fallthru
        _
    $region28: #{spectral_conv2d.1} parent=5 // pred_fallthru
      _
    %p663 = scmp.le.s32.totalorder 2, %s8
    // Predicated region
    $region33: #{spectral_conv2d.1} parent=5 // pred_check
      %p664 = pneg %p663
    $region34: #{spectral_conv2d.1} parent=5 // pred_check_branch
      %666 = sbr.rel (%p664) target = $region36
    $region35: #{spectral_conv2d.1} parent=5 // pred_region
      %s667 = ssub.s32 %s8, 2
      // Predicated region
      $region37: #{spectral_conv2d.1} parent=35 // pred_check
        %p668 = pneg %p89
      $region38: #{spectral_conv2d.1} parent=35 // pred_check_branch
        %670 = sbr.rel (%p668) target = $region40
      $region39: #{spectral_conv2d.1} parent=35 // pred_region
        %s671 = smul.u32 8, %s14
        %p672 = scmp.lt.s32.totalorder %s671, 31
        %s673 = scalar_select %p672, %s671, 31
        %s674 = smul.addr %s673, 2
        %s675 = scalar_lea.vmem %s2, %s674
      $region40: #{spectral_conv2d.1} parent=35 // pred_fallthru
        _
    $region36: #{spectral_conv2d.1} parent=5 // pred_fallthru
      _
  $region6: #{spectral_conv2d.1} parent=0 // loop_footer
    %s12 = sadd.s32 1, %s8
  $region7: #{spectral_conv2d.1} parent=0 // loop_footer_branch
    %7 = sbr.rel target = $region3
  $region8: #{spectral_conv2d.1} parent=0 // loop_exit
    _

</llo_original>
